<compile_context>
chip_gen: v6e
topology: v6e:2x2x1
jax: 0.10.0
libtpu: 0.0.40
codegen_flags: <defaults>
</compile_context>

<pallas_src>
import jax
import jax.numpy as jnp
from jax import lax
from jax.experimental import pallas as pl
from jax.experimental.pallas import tpu as pltpu

_LANE = 128
_QMAX = 127.5
_EPS = 1e-7


# --------------------------------------------------------------------------
# Fused single-block path (tensor resident in VMEM).
# --------------------------------------------------------------------------
def _fused_kernel(x_ref, o_ref):
    xf = x_ref[...].astype(jnp.float32)
    amax = jnp.max(jnp.abs(xf))
    scale = _QMAX / (amax + _EPS)
    inv_scale = (amax + _EPS) / _QMAX          # scalar div; avoids per-elem divide
    q = jnp.clip(jnp.round(xf * scale), -_QMAX, _QMAX)
    o_ref[...] = (q * inv_scale).astype(o_ref.dtype)


# --------------------------------------------------------------------------
# Two-pass path for large tensors.
# --------------------------------------------------------------------------
def _make_absmax_kernel(row_tile, rows):
    """Per-block partial abs-max, reduced only to an (8,128) vreg (pure VPU)."""
    ragged = (rows % row_tile) != 0

    def kernel(x_ref, m_ref):
        xa = jnp.abs(x_ref[...].astype(jnp.float32))
        if ragged:
            # Mask rows past the real extent of the array (clipped-DMA tail
            # contains unspecified data which must not pollute the max).
            row0 = pl.program_id(0) * row_tile
            rid = row0 + lax.broadcasted_iota(jnp.int32, (row_tile, _LANE), 0)
            xa = jnp.where(rid < rows, xa, 0.0)
        # (row_tile,128) -> (row_tile//8, 8, 128): elementwise max over vreg slabs.
        m_ref[...] = xa.reshape(row_tile // 8, 8, _LANE).max(axis=0)

    return kernel


def _quant_kernel(s_ref, x_ref, o_ref):
    scale = s_ref[0]
    inv_scale = s_ref[1]
    xf = x_ref[...].astype(jnp.float32)
    q = jnp.clip(jnp.round(xf * scale), -_QMAX, _QMAX)
    o_ref[...] = (q * inv_scale).astype(o_ref.dtype)


# --------------------------------------------------------------------------
# Wrapper
# --------------------------------------------------------------------------
def bit_activation_quant(x, *, row_tile=1024, fused_bytes=4 * 1024 * 1024,
                         force_two_pass=False):
    orig_shape = x.shape
    orig_dtype = x.dtype
    n = x.size

    flat = x.reshape(-1)                       # metadata-only for contiguous x
    pad = (-n) % _LANE
    if pad:
        # TODO(synk): the <128-element tail pad still costs one HBM copy; a fully
        # copy-free ragged path would need 1-D blocks + in-kernel tail masking.
        flat = jnp.pad(flat, (0, pad))
    rows = flat.shape[0] // _LANE
    x2d = flat.reshape(rows, _LANE)            # lane-dense view, no dtype change

    if (rows * _LANE * 4 <= fused_bytes) and not force_two_pass:
        # Single fused kernel: one read + one write of the tensor.
        out2d = pl.pallas_call(
            _fused_kernel,
            out_shape=jax.ShapeDtypeStruct((rows, _LANE), orig_dtype),
        )(x2d)
    else:
        # Effective tile: multiple of 8 sublanes, not (much) larger than rows.
        rt = max(8, min(row_tile, (max(rows, 8) // 8) * 8))
        nb = pl.cdiv(rows, rt)

        # Pass 1: per-block (8,128) partial abs-max; fully parallel grid.
        partial = pl.pallas_call(
            _make_absmax_kernel(rt, rows),
            out_shape=jax.ShapeDtypeStruct((nb * 8, _LANE), jnp.float32),
            grid=(nb,),
            in_specs=[pl.BlockSpec((rt, _LANE), lambda i: (i, 0))],
            out_specs=pl.BlockSpec((8, _LANE), lambda i: (i, 0)),
            compiler_params=pltpu.CompilerParams(
                dimension_semantics=("parallel",),
                vmem_limit_bytes=32 * 1024 * 1024),
        )(x2d)

        amax = jnp.max(partial)                # tiny XLA reduce over nb*8*128 f32
        scale = _QMAX / (amax + _EPS)
        inv_scale = (amax + _EPS) / _QMAX
        scales = jnp.stack([scale, inv_scale]).astype(jnp.float32)

        # Pass 2: elementwise quant/dequant, scalar broadcast from SMEM.
        out2d = pl.pallas_call(
            _quant_kernel,
            out_shape=jax.ShapeDtypeStruct((rows, _LANE), orig_dtype),
            grid=(nb,),
            in_specs=[
                pl.BlockSpec(memory_space=pltpu.SMEM),
                pl.BlockSpec((rt, _LANE), lambda i: (i, 0)),
            ],
            out_specs=pl.BlockSpec((rt, _LANE), lambda i: (i, 0)),
            compiler_params=pltpu.CompilerParams(
                dimension_semantics=("parallel",),
                vmem_limit_bytes=32 * 1024 * 1024),
        )(scales, x2d)

    if pad:
        out = out2d.reshape(-1)[:n].reshape(orig_shape)
    else:
        out = out2d.reshape(orig_shape)        # metadata-only
    return out


def _reference(x):
    """Pure-JAX reference of the PyTorch forward."""
    xf = x.astype(jnp.float32)
    scale = _QMAX / (jnp.max(jnp.abs(xf)) + _EPS)
    q = jnp.clip(jnp.round(xf * scale), -_QMAX, _QMAX)
    return (q / scale).astype(x.dtype)


if __name__ == "__main__":
    key = jax.random.PRNGKey(0)
    x = jax.random.normal(key, (2, 4, 16, 16), dtype=jnp.float32)
    ref = _reference(x)

    # Fused (VMEM-resident) path — the one real activations of this size take.
    out = jax.block_until_ready(bit_activation_quant(x))
    assert out.shape == x.shape and out.dtype == x.dtype
    assert jnp.allclose(out, ref, atol=1e-6, rtol=1e-5)

    # Tiled two-pass path (used for large activations), exercised on the same data.
    out2 = jax.block_until_ready(bit_activation_quant(x, force_two_pass=True))
    assert jnp.allclose(out2, ref, atol=1e-6, rtol=1e-5)

    # Ragged size: numel not a multiple of 128 and rows not a multiple of the tile.
    x3 = jax.random.normal(jax.random.PRNGKey(0), (3, 5, 18, 14), dtype=jnp.float32)
    ref3 = _reference(x3)
    out3a = jax.block_until_ready(bit_activation_quant(x3))
    out3b = jax.block_until_ready(bit_activation_quant(x3, force_two_pass=True))
    assert jnp.allclose(out3a, ref3, atol=1e-6, rtol=1e-5)
    assert jnp.allclose(out3b, ref3, atol=1e-6, rtol=1e-5)

    print("KERNEL_OK")
</pallas_src>

<mosaic_0001>
module attributes {stable_mosaic.version = 11 : i64} {
  func.func @_fused_kernel(%arg0: memref<16x128xf32, #tpu.memory_space<vmem>>, %arg1: memref<16x128xf32, #tpu.memory_space<vmem>>) attributes {dimension_semantics = [], scalar_prefetch = 0 : i64, scratch_operands = 0 : i64, tpu.core_type = #tpu.core_type<tc>} {
    %c0 = arith.constant 0 : index
    %c0_0 = arith.constant 0 : index
    %0 = vector.load %arg0[%c0, %c0_0] : memref<16x128xf32, #tpu.memory_space<vmem>>, vector<16x128xf32>
    %1 = math.absf %0 : vector<16x128xf32>
    %2 = vector.shape_cast %1 : vector<16x128xf32> to vector<1x16x128xf32>
    %cst = arith.constant dense<0xFF800000> : vector<1xf32>
    %3 = vector.multi_reduction <maximumf>, %2, %cst [1, 2] : vector<1x16x128xf32> to vector<1xf32>
    %4 = vector.shape_cast %3 : vector<1xf32> to vector<1x1x1xf32>
    %5 = vector.extract %4[0, 0, 0] : f32 from vector<1x1x1xf32>
    %cst_1 = arith.constant 1.000000e-07 : f32
    %6 = arith.addf %5, %cst_1 : f32
    %cst_2 = arith.constant 1.275000e+02 : f32
    %7 = arith.divf %cst_2, %6 : f32
    %cst_3 = arith.constant 1.000000e-07 : f32
    %8 = arith.addf %5, %cst_3 : f32
    %cst_4 = arith.constant 1.275000e+02 : f32
    %9 = arith.divf %8, %cst_4 : f32
    %10 = vector.broadcast %7 : f32 to vector<16x128xf32>
    %11 = arith.mulf %0, %10 : vector<16x128xf32>
    %12 = math.roundeven %11 : vector<16x128xf32>
    %cst_5 = arith.constant -1.275000e+02 : f32
    %cst_6 = arith.constant 1.275000e+02 : f32
    %13 = vector.broadcast %cst_5 : f32 to vector<16x128xf32>
    %14 = arith.maximumf %13, %12 : vector<16x128xf32>
    %15 = vector.broadcast %cst_6 : f32 to vector<16x128xf32>
    %16 = arith.minimumf %15, %14 : vector<16x128xf32>
    %17 = vector.broadcast %9 : f32 to vector<16x128xf32>
    %18 = arith.mulf %16, %17 : vector<16x128xf32>
    %c0_7 = arith.constant 0 : index
    %c0_8 = arith.constant 0 : index
    %19 = vector.load %arg1[%c0_7, %c0_8] : memref<16x128xf32, #tpu.memory_space<vmem>>, vector<16x128xf32>
    tpu.vector_store %arg1[%c0_7, %c0_8], %18 {strides = array<i32>} : memref<16x128xf32, #tpu.memory_space<vmem>>, vector<16x128xf32>,
    return
  }
}

</mosaic_0001>

<llo_original>
// kernel: tpu_custom_call.1
$region0: #{tpu_custom_call.1}
  #allocation0 [shape = 'u32[]', space=smem, size = 0x4, offset = 0x4, fixed_abs, tag = 'smem constant byte address 0x4 - core index']
  #allocation1 [shape = 'u32[144,128]{1,0:T(1,128)}', space=vmem, size = 0x12000, scoped, tag = 'internal scratch']
  %s0 = inlined_call_operand.hbm [shape: f32[16,128], index: 0, kind: input, shape index: {}]
  %s1 = inlined_call_operand.hbm [shape: f32[16,128], index: 1, kind: output, shape index: {}]
  %s2 = sld [smem:[#allocation0]]
  $region18: #{tpu_custom_call.1} parent=0
    _
  %s4 = ssub.s32 1, %s2
  %s5 = scalar_select 0, %s4, %s2
  $region1: #{tpu_custom_call.1} parent=0
    #allocation2 [shape = 'u8[8192]{0}', space=vmem, size = 0x2000, scoped, tag = 'input window, operand 0, single buffered']
    #allocation3 [shape = 's32[1]{0}', space=sflag, size = 0x4, scoped, tag = 'scoped memory for tpu_custom_call.1']
    #allocation4 [shape = 's32[1]{0}', space=sflag, size = 0x4, scoped, tag = 'scoped memory for tpu_custom_call.1']
    #allocation5 [shape = 'u8[8192]{0}', space=vmem, size = 0x2000, scoped, tag = 'output window, operand 0, single buffered']
    %6 = vsyncpa [#allocation3], 0
    %7 = vsyncpa [#allocation4], 0
    // Predicated region
    $region2: #{tpu_custom_call.1} parent=1 // pred_check
      _
    $region3: #{tpu_custom_call.1} parent=1 // pred_check_branch
      %9 = sbr.rel (0) target = $region5
    $region4: #{tpu_custom_call.1} parent=1 // pred_region
      %s11 = ssub.s32 256, 256
      %12 = vsyncadd [#allocation3], %s11
      %s13 = sshll.u32 [#allocation2], 4
      %s14 = int_to_ptr.vmem [resolvable:$true] %s13
      %19 = dma.hbm_to_vmem [thread:$0]  %s0, 256, %s14, [#allocation3], 128, 128, 8
    $region5: #{tpu_custom_call.1} parent=1 // pred_fallthru
      _
    // Predicated region
    $region6: #{tpu_custom_call.1} parent=1 // pred_check
      _
    $region7: #{tpu_custom_call.1} parent=1 // pred_check_branch
      %21 = sbr.rel (0) target = $region9
    $region8: #{tpu_custom_call.1} parent=1 // pred_region
      %22 = dma.done [#allocation3], 256
    $region9: #{tpu_custom_call.1} parent=1 // pred_fallthru
      _
    %v23 = vld [vmem:[#allocation2] sm:$0xff]
    %v24 = vld [vmem:[#allocation2 + $0x8] sm:$0xff]
    %v25 = vand.u32 2147483647, %v23
    %v26 = vand.u32 2147483647, %v24
    %v27 = vmax.f32 %v25, %v26
    %28 = vmax.xlane.f32.xlu0 %v27
    %v29 = vpop.xlane.xlu0 %28
    %v30 = vrot.slane %v29, 4
    %v31 = vmax.f32 %v29, %v30
    %v32 = vrot.slane %v31, 2
    %v33 = vmax.f32 %v31, %v32
    %v34 = vrot.slane %v33, 1
    %v35 = vmax.f32 %v33, %v34
    %s36 = vtos %v35
    %s37 = sadd.f32 %s36, 1e-07
    %v38 = vstv %s37
    %v39 = vrcp.pop %v38
    %s40 = vtos %v39
    %s41 = smul.f32 127.5, %s40
    %v42 = vrcp.pop 127.5
    %s43 = vtos %v42
    %s44 = smul.f32 %s37, %s43
    %v45 = vstv %s41
    %v46 = vmul.f32 %v23, %v45
    %v47 = vmul.f32 %v24, %v45
    %v48 = vround.ne.pseudo %v46
    %v49 = vround.ne.pseudo %v47
    %v50 = vmax.f32 %v48, -127.5
    %v51 = vmax.f32 %v49, -127.5
    %v52 = vmin.f32 %v50, 127.5
    %v53 = vmin.f32 %v51, 127.5
    %v54 = vstv %s44
    %v55 = vmul.f32 %v52, %v54
    %v56 = vmul.f32 %v53, %v54
    %57 = vst [vmem:[#allocation5] sm:$0xff] %v55
    %58 = vst [vmem:[#allocation5 + $0x8] sm:$0xff] %v56
    // Predicated region
    $region10: #{tpu_custom_call.1} parent=1 // pred_check
      _
    $region11: #{tpu_custom_call.1} parent=1 // pred_check_branch
      %60 = sbr.rel (0) target = $region13
    $region12: #{tpu_custom_call.1} parent=1 // pred_region
      %s62 = ssub.s32 256, 256
      %63 = vsyncadd [#allocation4], %s62
      %s64 = sshll.u32 [#allocation5], 4
      %s65 = int_to_ptr.vmem [resolvable:$true] %s64
      %70 = dma.vmem_to_hbm [thread:$0]  %s65, 256, %s1, [#allocation4], 128, 128, 8
    $region13: #{tpu_custom_call.1} parent=1 // pred_fallthru
      _
    // Predicated region
    $region14: #{tpu_custom_call.1} parent=1 // pred_check
      _
    $region15: #{tpu_custom_call.1} parent=1 // pred_check_branch
      %72 = sbr.rel (0) target = $region17
    $region16: #{tpu_custom_call.1} parent=1 // pred_region
      %73 = dma.done [#allocation4], 256
    $region17: #{tpu_custom_call.1} parent=1 // pred_fallthru
      _
    %74 = vsyncpa [#allocation3], 1
    %75 = vsyncpa [#allocation4], 1

</llo_original>
